<compile_context>
chip_gen: v6e
topology: v6e:2x2x1
jax: 0.10.0
libtpu: 0.0.40
codegen_flags: <defaults>
</compile_context>

<pallas_src>
import functools

import jax
import jax.numpy as jnp
from jax import lax
from jax.experimental import pallas as pl
from jax.experimental.pallas import tpu as pltpu


def _pick_rows_tile(num_rows, row_bytes, itemsize, target_bytes=2 << 20):
    """Rows per block: ~target_bytes of input per block, sublane-aligned, and
    split into >= 2 grid steps when possible (v7x megacore sharding)."""
    sub = 8 * max(1, 4 // max(1, itemsize))      # 8 (f32), 16 (bf16), 32 (int8)
    if num_rows <= sub:
        return num_rows                          # full-dim block is always legal
    rt = min(num_rows, max(sub, target_bytes // max(row_bytes, 1)))
    if rt >= num_rows:                           # whole problem fits in one block:
        rt = (num_rows + 1) // 2                 # split it across the parallel axis
    rt = max(sub, (rt // sub) * sub)
    return min(rt, num_rows)


@functools.partial(jax.jit, static_argnums=1)
def maxpool2d(x, kernel_size):
    """Equivalent of torch.nn.MaxPool2d(kernel_size) forward
    (stride = kernel_size, padding = 0, ceil_mode = False)."""
    if isinstance(kernel_size, tuple):
        kh, kw = kernel_size
    else:
        kh = kw = int(kernel_size)

    N, C, H, W = x.shape
    H_out = (H - (kh - 1) - 1) // kh + 1         # PyTorch floor formula, padding=0
    W_out = (W - (kw - 1) - 1) // kw + 1
    assert H_out > 0 and W_out > 0, "kernel_size larger than input"

    # Ragged H: drop unused trailing rows so the free reshape below is valid.
    # (Copies only when H % kh != 0; ragged W is handled entirely in-kernel.)
    if H != H_out * kh:
        x = x[:, :, : H_out * kh, :]

    # Free row-major reshape: one row per (n, c, i_out); its kh*W lanes are the
    # kh input image rows feeding that output row, laid out back to back.
    R = N * C * H_out
    Wt = kh * W
    x2 = x.reshape(R, Wt)

    itemsize = jnp.dtype(x.dtype).itemsize
    rt = _pick_rows_tile(R, Wt * itemsize, itemsize)
    grid = (pl.cdiv(R, rt),)

    # One-hot selection matrices for the kw "phases":
    #   sel[s, m, j]  == 1.0  iff  m == j*kw + s   (compacts lane j*kw+s -> lane j)
    #   mask[s, 0, m] == 1.0  iff  lane m is selected by phase s for some j < W_out
    # (Built with plain jnp in the wrapper; tiny arrays, resident in VMEM.)
    if kw > 1:
        lane = jnp.arange(W, dtype=jnp.int32)
        outc = jnp.arange(W_out, dtype=jnp.int32)
        offs = jnp.arange(kw, dtype=jnp.int32)
        sel = (lane[None, :, None]
               == outc[None, None, :] * kw + offs[:, None, None]).astype(jnp.float32)
        mask = jnp.max(sel, axis=2)[:, None, :]
    else:                                        # kw == 1: no lane compaction needed
        sel = jnp.zeros((1, 1, 1), jnp.float32)  # unused dummies (never read)
        mask = jnp.zeros((1, 1, 1), jnp.float32)

    def kernel(x_ref, sel_ref, mask_ref, o_ref):
        # x_ref: (rt, kh*W)    o_ref: (rt, W_out)
        # 1) max over the kh window rows: contiguous lane segments of width W.
        y = x_ref[:, pl.ds(0, W)]
        for r in range(1, kh):
            y = jnp.maximum(y, x_ref[:, pl.ds(r * W, W)])

        if kw == 1:
            o_ref[...] = y.astype(o_ref.dtype)
            return

        # 2) max over the kw window columns.  For each phase s keep lanes
        #    {j*kw+s}, zero the rest (so dropped lanes cannot leak through the
        #    sum), compact W -> W_out lanes with a one-hot matmul on the MXU,
        #    then take the elementwise max over the kw phases.
        # TODO(synk): with non-finite inputs (NaN / +-Inf) a 0*Inf / 0*NaN
        # product in the compaction matmul can leak NaN into sibling windows of
        # the same output row; finite inputs (the normal case) are exact.
        yf = y.astype(jnp.float32)
        out = None
        for s in range(kw):
            ys = jnp.where(mask_ref[s] != 0.0, yf, 0.0)
            cs = jnp.dot(ys, sel_ref[s],
                         preferred_element_type=jnp.float32,
                         precision=lax.Precision.HIGHEST)
            out = cs if out is None else jnp.maximum(out, cs)
        o_ref[...] = out.astype(o_ref.dtype)

    out2 = pl.pallas_call(
        kernel,
        out_shape=jax.ShapeDtypeStruct((R, W_out), x.dtype),
        grid=grid,
        in_specs=[
            pl.BlockSpec((rt, Wt), lambda i: (i, 0)),
            pl.BlockSpec(sel.shape, lambda i: (0, 0, 0)),
            pl.BlockSpec(mask.shape, lambda i: (0, 0, 0)),
        ],
        out_specs=pl.BlockSpec((rt, W_out), lambda i: (i, 0)),
        compiler_params=pltpu.CompilerParams(
            dimension_semantics=("parallel",)),
    )(x2, sel, mask)

    return out2.reshape(N, C, H_out, W_out)


if __name__ == "__main__":
    key = jax.random.PRNGKey(0)
    k1, k2 = jax.random.split(key)

    # Case 1: the module's nominal small config (batch=2, channels=4, 16x16, 2x2 pool).
    N, C, H, W = 2, 4, 16, 16
    ks = 2
    x = jax.random.normal(k1, (N, C, H, W), dtype=jnp.float32)
    # Keep values on the bf16 grid so the one-hot compaction matmul is bit-exact
    # for the check regardless of which MXU precision mode the compiler picks.
    x = x.astype(jnp.bfloat16).astype(jnp.float32)

    out = jax.block_until_ready(maxpool2d(x, ks))

    Ho, Wo = H // ks, W // ks
    ref = jnp.max(
        x[:, :, :Ho * ks, :Wo * ks].reshape(N, C, Ho, ks, Wo, ks), axis=(3, 5))
    assert out.shape == (N, C, Ho, Wo) and out.dtype == x.dtype
    assert jnp.allclose(out, ref), "case 1 mismatch"

    # Case 2: ragged spatial dims + 3x3 pool (exercises PyTorch-style edge truncation).
    N2, C2, H2, W2, ks2 = 2, 3, 17, 17, 3
    xb = jax.random.normal(k2, (N2, C2, H2, W2), dtype=jnp.float32)
    xb = xb.astype(jnp.bfloat16).astype(jnp.float32)
    out_b = jax.block_until_ready(maxpool2d(xb, ks2))
    Ho2, Wo2 = H2 // ks2, W2 // ks2
    ref_b = jnp.max(
        xb[:, :, :Ho2 * ks2, :Wo2 * ks2].reshape(N2, C2, Ho2, ks2, Wo2, ks2),
        axis=(3, 5))
    assert out_b.shape == (N2, C2, Ho2, Wo2)
    assert jnp.allclose(out_b, ref_b), "case 2 mismatch"

    print("KERNEL_OK")
</pallas_src>

<mosaic_0001>
module attributes {stable_mosaic.version = 11 : i64} {
  func.func @kernel(%arg0: i32, %arg1: memref<32x32xf32, #tpu.memory_space<vmem>>, %arg2: memref<2x16x8xf32, #tpu.memory_space<vmem>>, %arg3: memref<2x1x16xf32, #tpu.memory_space<vmem>>, %arg4: memref<32x8xf32, #tpu.memory_space<vmem>>) attributes {dimension_semantics = [#tpu.dimension_semantics<parallel>], iteration_bounds = array<i64: 2>, scalar_prefetch = 0 : i64, scratch_operands = 0 : i64, tpu.core_type = #tpu.core_type<tc>, window_params = [{transform_indices = @transform_0, window_bounds = array<i64: 32, 32>}, {pipeline_mode = #tpu.pipeline_mode<synchronous>, transform_indices = @transform_1, window_bounds = array<i64: 2, 16, 8>}, {pipeline_mode = #tpu.pipeline_mode<synchronous>, transform_indices = @transform_2, window_bounds = array<i64: 2, 1, 16>}, {transform_indices = @transform_3, window_bounds = array<i64: 32, 8>}]} {
    %c0 = arith.constant 0 : index
    %c0_0 = arith.constant 0 : index
    %0 = vector.load %arg1[%c0, %c0_0] : memref<32x32xf32, #tpu.memory_space<vmem>>, vector<32x16xf32>
    %c0_1 = arith.constant 0 : index
    %c16 = arith.constant 16 : index
    %1 = vector.load %arg1[%c0_1, %c16] : memref<32x32xf32, #tpu.memory_space<vmem>>, vector<32x16xf32>
    %2 = arith.maximumf %0, %1 : vector<32x16xf32>
    %c0_2 = arith.constant 0 : index
    %c0_3 = arith.constant 0 : index
    %c0_4 = arith.constant 0 : index
    %3 = vector.load %arg3[%c0_2, %c0_3, %c0_4] : memref<2x1x16xf32, #tpu.memory_space<vmem>>, vector<1x1x16xf32>
    %4 = vector.shape_cast %3 : vector<1x1x16xf32> to vector<1x16xf32>
    %cst = arith.constant 0.000000e+00 : f32
    %5 = vector.broadcast %cst : f32 to vector<1x16xf32>
    %6 = arith.cmpf one, %4, %5 : vector<1x16xf32>
    %cst_5 = arith.constant 0.000000e+00 : f32
    %7 = vector.shape_cast %6 : vector<1x16xi1> to vector<1x16xi1>
    %8 = vector.broadcast %7 : vector<1x16xi1> to vector<32x16xi1>
    %9 = vector.broadcast %cst_5 : f32 to vector<32x16xf32>
    %10 = arith.select %8, %2, %9 : vector<32x16xi1>, vector<32x16xf32>
    %c0_6 = arith.constant 0 : index
    %c0_7 = arith.constant 0 : index
    %c0_8 = arith.constant 0 : index
    %11 = vector.load %arg2[%c0_6, %c0_7, %c0_8] : memref<2x16x8xf32, #tpu.memory_space<vmem>>, vector<1x16x8xf32>
    %12 = vector.shape_cast %11 : vector<1x16x8xf32> to vector<16x8xf32>
    %cst_9 = arith.constant dense<0.000000e+00> : vector<32x8xf32>
    %13 = tpu.matmul %10, %12, %cst_9 {dimension_numbers = #tpu.dot_dimension_numbers<[1], [0], [0], [1], [0, 0, 1, 1], [], []>, precision = #tpu.contract_precision<fp32>} : vector<32x16xf32>, vector<16x8xf32>, vector<32x8xf32> -> vector<32x8xf32>
    %c1 = arith.constant 1 : index
    %c0_10 = arith.constant 0 : index
    %c0_11 = arith.constant 0 : index
    %14 = vector.load %arg3[%c1, %c0_10, %c0_11] : memref<2x1x16xf32, #tpu.memory_space<vmem>>, vector<1x1x16xf32>
    %15 = vector.shape_cast %14 : vector<1x1x16xf32> to vector<1x16xf32>
    %cst_12 = arith.constant 0.000000e+00 : f32
    %16 = vector.broadcast %cst_12 : f32 to vector<1x16xf32>
    %17 = arith.cmpf one, %15, %16 : vector<1x16xf32>
    %cst_13 = arith.constant 0.000000e+00 : f32
    %18 = vector.shape_cast %17 : vector<1x16xi1> to vector<1x16xi1>
    %19 = vector.broadcast %18 : vector<1x16xi1> to vector<32x16xi1>
    %20 = vector.broadcast %cst_13 : f32 to vector<32x16xf32>
    %21 = arith.select %19, %2, %20 : vector<32x16xi1>, vector<32x16xf32>
    %c1_14 = arith.constant 1 : index
    %c0_15 = arith.constant 0 : index
    %c0_16 = arith.constant 0 : index
    %22 = vector.load %arg2[%c1_14, %c0_15, %c0_16] : memref<2x16x8xf32, #tpu.memory_space<vmem>>, vector<1x16x8xf32>
    %23 = vector.shape_cast %22 : vector<1x16x8xf32> to vector<16x8xf32>
    %cst_17 = arith.constant dense<0.000000e+00> : vector<32x8xf32>
    %24 = tpu.matmul %21, %23, %cst_17 {dimension_numbers = #tpu.dot_dimension_numbers<[1], [0], [0], [1], [0, 0, 1, 1], [], []>, precision = #tpu.contract_precision<fp32>} : vector<32x16xf32>, vector<16x8xf32>, vector<32x8xf32> -> vector<32x8xf32>
    %25 = arith.maximumf %13, %24 : vector<32x8xf32>
    %c0_18 = arith.constant 0 : index
    %c0_19 = arith.constant 0 : index
    %26 = vector.load %arg4[%c0_18, %c0_19] : memref<32x8xf32, #tpu.memory_space<vmem>>, vector<32x8xf32>
    tpu.vector_store %arg4[%c0_18, %c0_19], %25 {strides = array<i32>} : memref<32x8xf32, #tpu.memory_space<vmem>>, vector<32x8xf32>,
    return
  }
  func.func @transform_0(%arg0: i32) -> (i32, i32) {
    %c0_i32 = arith.constant 0 : i32
    %c0_i32_0 = arith.constant 0 : i32
    return %arg0, %c0_i32 : i32, i32
  }
  func.func @transform_1(%arg0: i32) -> (i32, i32, i32) {
    %c0_i32 = arith.constant 0 : i32
    %c0_i32_0 = arith.constant 0 : i32
    %c0_i32_1 = arith.constant 0 : i32
    %c0_i32_2 = arith.constant 0 : i32
    return %c0_i32, %c0_i32_0, %c0_i32_1 : i32, i32, i32
  }
  func.func @transform_2(%arg0: i32) -> (i32, i32, i32) {
    %c0_i32 = arith.constant 0 : i32
    %c0_i32_0 = arith.constant 0 : i32
    %c0_i32_1 = arith.constant 0 : i32
    %c0_i32_2 = arith.constant 0 : i32
    return %c0_i32, %c0_i32_0, %c0_i32_1 : i32, i32, i32
  }
  func.func @transform_3(%arg0: i32) -> (i32, i32) {
    %c0_i32 = arith.constant 0 : i32
    %c0_i32_0 = arith.constant 0 : i32
    return %arg0, %c0_i32 : i32, i32
  }
}

</mosaic_0001>

<llo_original>
// kernel: maxpool2d.1
$region0: #{maxpool2d.1}
  #allocation0 [shape = 'u32[]', space=smem, size = 0x4, offset = 0x4, fixed_abs, tag = 'smem constant byte address 0x4 - core index']
  #allocation1 [shape = 'u32[144,128]{1,0:T(1,128)}', space=vmem, size = 0x12000, scoped, tag = 'internal scratch']
  %s0 = inlined_call_operand.vmem [shape: f32[64,32], index: 0, kind: input, shape index: {}]
  %s1 = inlined_call_operand.vmem [shape: f32[2,16,8], index: 1, kind: input, shape index: {}]
  %s2 = inlined_call_operand.vmem [shape: f32[2,1,16], index: 2, kind: input, shape index: {}]
  %s3 = inlined_call_operand.hbm [shape: f32[64,8], index: 3, kind: output, shape index: {}]
  %s4 = sld [smem:[#allocation0]]
  $region45: #{maxpool2d.1} parent=0
    _
  %s6 = ssub.s32 1, %s4
  %s7 = scalar_select 0, %s6, %s4
  $region1: #{maxpool2d.1} parent=0
    #allocation2 [shape = 'u8[32768]{0}', space=vmem, size = 0x8000, scoped, tag = 'output window, operand 0']
    #allocation3 [shape = 's32[2]{0}', space=sflag, size = 0x8, scoped, tag = 'scoped memory for maxpool2d.1']
    %8 = vsyncpa [#allocation3], 0
    %s9 = scalar_lea.sflag [#allocation3], 1
    %10 = vsyncpa %s9, 0
    loop: start=0, step=1, limit=4
    $region2: #{maxpool2d.1} parent=1 // loop_pre_header
      _
    $region3: #{maxpool2d.1} parent=1 // loop_header
      %s12 = sphi 0, %s16
      %p13 = scmp.ge.s32.totalorder %s12, 4
      %s22 = sphi 0, %s24
      %s25 = sphi 0, %s22
      %s26 = sphi 0, %s25
      %s42 = sphi 0, %s26
      %s46 = sphi 0, %s46
      %s48 = sphi 0, %s46
      %s49 = sphi 0, %s48
      %s63 = sphi 0, %s49
      %s67 = sphi 0, %s67
      %s69 = sphi 0, %s67
      %s70 = sphi 0, %s69
      %s84 = sphi 0, %s70
      %s90 = sphi 0, %s92
      %s93 = sphi 0, %s90
      %s94 = sphi 0, %s93
      %s110 = sphi 0, %s94
    $region4: #{maxpool2d.1} parent=1 // loop_header_branch
      %15 = sbr.rel (%p13) target = $region8
    $region5: #{maxpool2d.1} parent=1 // loop_body
      %s17 = ssub.s32 %s12, 1
      %s18 = ssub.s32 %s12, 2
      %s19 = sadd.s32 %s12, 1
      %s20 = ssub.s32 %s12, %s19
      %p21 = scmp.eq.s32.totalorder %s20, 0
      %s23 = sadd.s32 %s22, 1
      %s24 = scalar_select %p21, %s22, %s23
      %p27 = pneg %p21
      %p28 = scmp.eq.s32.totalorder %s12, 1
      %p29 = por %p27, %p28
      %p30 = scmp.ne.s32.totalorder %s22, %s25
      %p31 = scmp.eq.s32.totalorder %s12, 0
      %p32 = por %p30, %p31
      %p33 = scmp.ne.s32.totalorder %s22, %s25
      %p34 = scmp.eq.s32.totalorder %s17, 1
      %p35 = por %p33, %p34
      %p36 = scmp.ne.s32.totalorder %s25, %s26
      %p37 = scmp.eq.s32.totalorder %s17, 0
      %p38 = por %p36, %p37
      %p39 = scmp.ne.s32.totalorder %s25, %s26
      %p40 = scmp.eq.s32.totalorder %s18, 1
      %p41 = por %p39, %p40
      %p43 = scmp.ne.s32.totalorder %s26, %s42
      %p44 = scmp.eq.s32.totalorder %s18, 0
      %p45 = por %p43, %p44
      %s47 = sadd.s32 %s46, 1
      %p50 = scmp.eq.s32.totalorder %s12, 1
      %p51 = scmp.ne.s32.totalorder %s46, %s48
      %p52 = scmp.eq.s32.totalorder %s12, 0
      %p53 = por %p51, %p52
      %p54 = scmp.ne.s32.totalorder %s46, %s48
      %p55 = scmp.eq.s32.totalorder %s17, 1
      %p56 = por %p54, %p55
      %p57 = scmp.ne.s32.totalorder %s48, %s49
      %p58 = scmp.eq.s32.totalorder %s17, 0
      %p59 = por %p57, %p58
      %p60 = scmp.ne.s32.totalorder %s48, %s49
      %p61 = scmp.eq.s32.totalorder %s18, 1
      %p62 = por %p60, %p61
      %p64 = scmp.ne.s32.totalorder %s49, %s63
      %p65 = scmp.eq.s32.totalorder %s18, 0
      %p66 = por %p64, %p65
      %s68 = sadd.s32 %s67, 1
      %p71 = scmp.eq.s32.totalorder %s12, 1
      %p72 = scmp.ne.s32.totalorder %s67, %s69
      %p73 = scmp.eq.s32.totalorder %s12, 0
      %p74 = por %p72, %p73
      %p75 = scmp.ne.s32.totalorder %s67, %s69
      %p76 = scmp.eq.s32.totalorder %s17, 1
      %p77 = por %p75, %p76
      %p78 = scmp.ne.s32.totalorder %s69, %s70
      %p79 = scmp.eq.s32.totalorder %s17, 0
      %p80 = por %p78, %p79
      %p81 = scmp.ne.s32.totalorder %s69, %s70
      %p82 = scmp.eq.s32.totalorder %s18, 1
      %p83 = por %p81, %p82
      %p85 = scmp.ne.s32.totalorder %s70, %s84
      %p86 = scmp.eq.s32.totalorder %s18, 0
      %p87 = por %p85, %p86
      %s88 = ssub.s32 %s12, %s19
      %p89 = scmp.eq.s32.totalorder %s88, 0
      %s91 = sadd.s32 %s90, 1
      %s92 = scalar_select %p89, %s90, %s91
      %p95 = pneg %p89
      %p96 = scmp.eq.s32.totalorder %s12, 1
      %p97 = por %p95, %p96
      %p98 = scmp.ne.s32.totalorder %s90, %s93
      %p99 = scmp.eq.s32.totalorder %s12, 0
      %p100 = por %p98, %p99
      %p101 = scmp.ne.s32.totalorder %s90, %s93
      %p102 = scmp.eq.s32.totalorder %s17, 1
      %p103 = por %p101, %p102
      %p104 = scmp.ne.s32.totalorder %s93, %s94
      %p105 = scmp.eq.s32.totalorder %s17, 0
      %p106 = por %p104, %p105
      %p107 = scmp.ne.s32.totalorder %s93, %s94
      %p108 = scmp.eq.s32.totalorder %s18, 1
      %p109 = por %p107, %p108
      %p111 = scmp.ne.s32.totalorder %s94, %s110
      %p112 = scmp.eq.s32.totalorder %s18, 0
      %p113 = por %p111, %p112
      %p114 = scmp.le.s32.totalorder 1, %s12
      %p115 = scmp.lt.s32.totalorder %s12, 3
      %p116 = pnand %p114, %p115
      %p117 = pneg %p116
      // Predicated region
      $region9: #{maxpool2d.1} parent=5 // pred_check
        _
      $region10: #{maxpool2d.1} parent=5 // pred_check_branch
        %119 = sbr.rel (%p116) target = $region12
      $region11: #{maxpool2d.1} parent=5 // pred_region
        %s120 = ssub.s32 %s12, 1
        // Predicated region
        $region13: #{maxpool2d.1} parent=11 // pred_check
          %p121 = pneg %p59
        $region14: #{maxpool2d.1} parent=11 // pred_check_branch
          %123 = sbr.rel (%p121) target = $region16
        $region15: #{maxpool2d.1} parent=11 // pred_region
          _
        $region16: #{maxpool2d.1} parent=11 // pred_fallthru
          _
        // Predicated region
        $region17: #{maxpool2d.1} parent=11 // pred_check
          %p124 = pneg %p80
        $region18: #{maxpool2d.1} parent=11 // pred_check_branch
          %126 = sbr.rel (%p124) target = $region20
        $region19: #{maxpool2d.1} parent=11 // pred_region
          _
        $region20: #{maxpool2d.1} parent=11 // pred_fallthru
          _
      $region12: #{maxpool2d.1} parent=5 // pred_fallthru
        _
      %p127 = scmp.lt.s32.totalorder %s12, 2
      // Predicated region
      $region21: #{maxpool2d.1} parent=5 // pred_check
        %p128 = pneg %p127
      $region22: #{maxpool2d.1} parent=5 // pred_check_branch
        %130 = sbr.rel (%p128) target = $region24
      $region23: #{maxpool2d.1} parent=5 // pred_region
        // Predicated region
        $region25: #{maxpool2d.1} parent=23 // pred_check
          %p131 = pneg %p32
        $region26: #{maxpool2d.1} parent=23 // pred_check_branch
          %133 = sbr.rel (%p131) target = $region28
        $region27: #{maxpool2d.1} parent=23 // pred_region
          %s134 = smul.u32 4, %s12
          %p135 = scmp.lt.s32.totalorder %s134, 7
          %s136 = scalar_select %p135, %s134, 7
          %s137 = smul.addr %s136, 8
          %s138 = scalar_lea.vmem %s0, %s137
          %s139 = smul.u32 4, %s12
        $region28: #{maxpool2d.1} parent=23 // pred_fallthru
          _
      $region24: #{maxpool2d.1} parent=5 // pred_fallthru
        _
      %p140 = scmp.le.s32.totalorder 1, %s12
      %p141 = scmp.lt.s32.totalorder %s12, 3
      %p142 = pnand %p140, %p141
      %p143 = pneg %p142
      // Predicated region
      $region29: #{maxpool2d.1} parent=5 // pred_check
        _
      $region30: #{maxpool2d.1} parent=5 // pred_check_branch
        %145 = sbr.rel (%p142) target = $region32
      $region31: #{maxpool2d.1} parent=5 // pred_region
        %s146 = ssub.s32 %s12, 1
        %s147 = smul.u32 4, %s17
        %p148 = scmp.lt.s32.totalorder %s147, 7
        %s149 = scalar_select %p148, %s147, 7
        %s150 = smul.addr %s149, 8
        %s151 = scalar_lea.vmem %s0, %s150
        %p152 = pneg %p38
        %p153 = pneg %p35
        %p154 = pneg %p59
        %p155 = pneg %p56
        %p156 = pneg %p80
        %p157 = pneg %p77
        %p158 = pneg %p106
        %p159 = pneg %p103
        %s160 = sand.u32 %s93, 1
        %s161 = scalar_lea.sflag [#allocation3], %s160
        %s162 = sand.u32 %s93, 1
        %s163 = smul.addr %s162, 32
        %s164 = scalar_lea.vmem [#allocation2], %s163
        %s165 = smul.u32 4, %s17
        %p166 = scmp.lt.s32.totalorder %s165, 7
        %s167 = scalar_select %p166, %s165, 7
        %s168 = smul.addr %s167, 8
        %s169 = scalar_lea.vmem %s0, %s168
        %s170 = smul.u32 4, %s17
        %s171 = smul.u32 4, %s17
        %v172 = vld [vmem:[%s169] sm:$0xff]
        %v173 = vld [vmem:[%s169 + $0x8] sm:$0xff]
        %v174 = vld [vmem:[%s169 + $0x10] sm:$0xff]
        %v175 = vld [vmem:[%s169 + $0x18] sm:$0xff]
        %180 = vrot.lane.b32.xlu0 %v172, 112
        %v181 = vpop.permute.xlu0 %180
        %182 = vrot.lane.b32.xlu0 %v173, 112
        %v183 = vpop.permute.xlu0 %182
        %184 = vrot.lane.b32.xlu0 %v174, 112
        %v185 = vpop.permute.xlu0 %184
        %186 = vrot.lane.b32.xlu0 %v175, 112
        %v187 = vpop.permute.xlu0 %186
        %v192 = vmax.f32 %v172, %v181
        %v193 = vmax.f32 %v173, %v183
        %v194 = vmax.f32 %v174, %v185
        %v195 = vmax.f32 %v175, %v187
        %v196 = vld [vmem:[%s2] sm:$0x1]
        %vm197 = vcmp.ne.f32.partialorder %v196, 0.0
        %v198 = vsel %vm197, 1, 0
        %v199 = vlaneseq
        %v200 = vshrl.u32 %v199, 7
        %v201 = vsub.s32 0, %v200
        %v202 = vrot.slane %v198, %v201
        %vm203 = vcmp.eq.s32.totalorder %v202, 1
        %v204 = vsel %vm203, %v192, 0.0
        %v205 = vsel %vm203, %v193, 0.0
        %v206 = vsel %vm203, %v194, 0.0
        %v207 = vsel %vm203, %v195, 0.0
        %v208 = vld [vmem:[%s1] sm:$0xff]
        %v209 = vld [vmem:[%s1 + $0x8] sm:$0xff]
        %vm210 = vcmask 130048
        %v212 = vsel %vm210, %v204, 0
        %v215 = vsel %vm210, %v205, 0
        %v218 = vsel %vm210, %v206, 0
        %v221 = vsel %vm210, %v207, 0
        %223 = vmatprep.subr.mxu0 0.0
        %224 = vmatpush1.msra.mxu0 0.0
        %225 = vmatprep.subr.mxu0 0.0
        %226 = vmatpush1.msra.mxu0 0.0
        %227 = vmatprep.subr.mxu0 0.0
        %228 = vmatpush1.msra.mxu0 0.0
        %229 = vmatprep.subr.mxu0 0.0
        %230 = vmatpush1.msra.mxu0 0.0
        %231 = vmatprep.subr.mxu0 0.0
        %232 = vmatpush1.msra.mxu0 0.0
        %233 = vmatprep.subr.mxu0 0.0
        %234 = vmatpush1.msra.mxu0 0.0
        %235 = vmatprep.subr.mxu0 0.0
        %236 = vmatpush1.msra.mxu0 0.0
        %237 = vmatprep.subr.mxu0 0.0
        %238 = vmatpush1.msra.mxu0 0.0
        %239 = vmatprep.subr.mxu0 0.0
        %240 = vmatpush1.msra.mxu0 0.0
        %241 = vmatprep.subr.mxu0 0.0
        %242 = vmatpush1.msra.mxu0 0.0
        %243 = vmatprep.subr.mxu0 0.0
        %244 = vmatpush1.msra.mxu0 0.0
        %245 = vmatprep.subr.mxu0 0.0
        %246 = vmatpush1.msra.mxu0 0.0
        %247 = vmatprep.subr.mxu0 0.0
        %248 = vmatpush1.msra.mxu0 0.0
        %249 = vmatprep.subr.mxu0 0.0
        %250 = vmatpush1.msra.mxu0 0.0
        %251 = vmatprep.subr.mxu0 0.0
        %v252 = vand.u32 %v209, 4294901760
        %253 = vmatpush1.msra.mxu0 %v252
        %254 = vmatprep.subr.mxu0 0.0
        %v255 = vand.u32 %v208, 4294901760
        %256 = vmatpush1.msra.mxu0 %v255
        %257 = vmatprep.subr.mxu0 0.0
        %258 = vmatpush2.msra.mxu0 0.0
        %259 = vmatprep.subr.mxu0 0.0
        %260 = vmatpush2.msra.mxu0 0.0
        %261 = vmatprep.subr.mxu0 0.0
        %262 = vmatpush2.msra.mxu0 0.0
        %263 = vmatprep.subr.mxu0 0.0
        %264 = vmatpush2.msra.mxu0 0.0
        %265 = vmatprep.subr.mxu0 0.0
        %266 = vmatpush2.msra.mxu0 0.0
        %267 = vmatprep.subr.mxu0 0.0
        %268 = vmatpush2.msra.mxu0 0.0
        %269 = vmatprep.subr.mxu0 0.0
        %270 = vmatpush2.msra.mxu0 0.0
        %271 = vmatprep.subr.mxu0 0.0
        %272 = vmatpush2.msra.mxu0 0.0
        %273 = vmatprep.subr.mxu0 0.0
        %274 = vmatpush2.msra.mxu0 0.0
        %275 = vmatprep.subr.mxu0 0.0
        %276 = vmatpush2.msra.mxu0 0.0
        %277 = vmatprep.subr.mxu0 0.0
        %278 = vmatpush2.msra.mxu0 0.0
        %279 = vmatprep.subr.mxu0 0.0
        %280 = vmatpush2.msra.mxu0 0.0
        %281 = vmatprep.subr.mxu0 0.0
        %282 = vmatpush2.msra.mxu0 0.0
        %283 = vmatprep.subr.mxu0 0.0
        %284 = vmatpush2.msra.mxu0 0.0
        %285 = vmatprep.subr.mxu0 0.0
        %286 = vmatpush2.msra.mxu0 0.0
        %287 = vmatprep.subr.mxu0 0.0
        %288 = vmatpush2.msra.mxu0 0.0
        %289 = vmatprep.mubr.f32.mxu0 0.0
        %v290 = vand.u32 %v212, 4294901760
        %v291 = vsub.f32 %v212, %v290
        %v292 = vand.u32 %v291, 4294901760
        %v293 = vsub.f32 %v291, %v292
        %v294 = vand.u32 %v293, 4294901760
        %295 = vmatmul.mubr.f32.gmra.mxu0 %v294
        %v296 = vpop.f32.mrf.mxu0
        %v297 = vadd.f32 0.0, %v296
        %v298 = vpop.f32.mrf.mxu0
        %299 = vmatprep.mubr.f32.mxu0 0.0
        %v300 = vand.u32 %v215, 4294901760
        %v301 = vsub.f32 %v215, %v300
        %v302 = vand.u32 %v301, 4294901760
        %v303 = vsub.f32 %v301, %v302
        %v304 = vand.u32 %v303, 4294901760
        %305 = vmatmul.mubr.f32.gmra.mxu0 %v304
        %v306 = vpop.f32.mrf.mxu0
        %v307 = vadd.f32 0.0, %v306
        %v308 = vpop.f32.mrf.mxu0
        %309 = vmatprep.mubr.f32.mxu0 0.0
        %v310 = vand.u32 %v218, 4294901760
        %v311 = vsub.f32 %v218, %v310
        %v312 = vand.u32 %v311, 4294901760
        %v313 = vsub.f32 %v311, %v312
        %v314 = vand.u32 %v313, 4294901760
        %315 = vmatmul.mubr.f32.gmra.mxu0 %v314
        %v316 = vpop.f32.mrf.mxu0
        %v317 = vadd.f32 0.0, %v316
        %v318 = vpop.f32.mrf.mxu0
        %319 = vmatprep.mubr.f32.mxu0 0.0
        %v320 = vand.u32 %v221, 4294901760
        %v321 = vsub.f32 %v221, %v320
        %v322 = vand.u32 %v321, 4294901760
        %v323 = vsub.f32 %v321, %v322
        %v324 = vand.u32 %v323, 4294901760
        %325 = vmatmul.mubr.f32.gmra.mxu0 %v324
        %v326 = vpop.f32.mrf.mxu0
        %v327 = vadd.f32 0.0, %v326
        %v328 = vpop.f32.mrf.mxu0
        %329 = vdwg.mxu0
        %330 = vmatprep.subr.mxu0 0.0
        %331 = vmatpush1.msra.mxu0 0.0
        %332 = vmatprep.subr.mxu0 0.0
        %333 = vmatpush1.msra.mxu0 0.0
        %334 = vmatprep.subr.mxu0 0.0
        %335 = vmatpush1.msra.mxu0 0.0
        %336 = vmatprep.subr.mxu0 0.0
        %337 = vmatpush1.msra.mxu0 0.0
        %338 = vmatprep.subr.mxu0 0.0
        %339 = vmatpush1.msra.mxu0 0.0
        %340 = vmatprep.subr.mxu0 0.0
        %341 = vmatpush1.msra.mxu0 0.0
        %342 = vmatprep.subr.mxu0 0.0
        %343 = vmatpush1.msra.mxu0 0.0
        %344 = vmatprep.subr.mxu0 0.0
        %345 = vmatpush1.msra.mxu0 0.0
        %346 = vmatprep.subr.mxu0 0.0
        %347 = vmatpush1.msra.mxu0 0.0
        %348 = vmatprep.subr.mxu0 0.0
        %349 = vmatpush1.msra.mxu0 0.0
        %350 = vmatprep.subr.mxu0 0.0
        %351 = vmatpush1.msra.mxu0 0.0
        %352 = vmatprep.subr.mxu0 0.0
        %353 = vmatpush1.msra.mxu0 0.0
        %354 = vmatprep.subr.mxu0 0.0
        %355 = vmatpush1.msra.mxu0 0.0
        %356 = vmatprep.subr.mxu0 0.0
        %357 = vmatpush1.msra.mxu0 0.0
        %358 = vmatprep.subr.mxu0 0.0
        %v359 = vand.u32 %v209, 4294901760
        %v360 = vsub.f32 %v209, %v359
        %v361 = vand.u32 %v360, 4294901760
        %v362 = vsub.f32 %v360, %v361
        %v363 = vand.u32 %v362, 4294901760
        %364 = vmatpush1.msra.mxu0 %v363
        %365 = vmatprep.subr.mxu0 0.0
        %v366 = vand.u32 %v208, 4294901760
        %v367 = vsub.f32 %v208, %v366
        %v368 = vand.u32 %v367, 4294901760
        %v369 = vsub.f32 %v367, %v368
        %v370 = vand.u32 %v369, 4294901760
        %371 = vmatpush1.msra.mxu0 %v370
        %372 = vmatprep.subr.mxu0 0.0
        %373 = vmatpush2.msra.mxu0 0.0
        %374 = vmatprep.subr.mxu0 0.0
        %375 = vmatpush2.msra.mxu0 0.0
        %376 = vmatprep.subr.mxu0 0.0
        %377 = vmatpush2.msra.mxu0 0.0
        %378 = vmatprep.subr.mxu0 0.0
        %379 = vmatpush2.msra.mxu0 0.0
        %380 = vmatprep.subr.mxu0 0.0
        %381 = vmatpush2.msra.mxu0 0.0
        %382 = vmatprep.subr.mxu0 0.0
        %383 = vmatpush2.msra.mxu0 0.0
        %384 = vmatprep.subr.mxu0 0.0
        %385 = vmatpush2.msra.mxu0 0.0
        %386 = vmatprep.subr.mxu0 0.0
        %387 = vmatpush2.msra.mxu0 0.0
        %388 = vmatprep.subr.mxu0 0.0
        %389 = vmatpush2.msra.mxu0 0.0
        %390 = vmatprep.subr.mxu0 0.0
        %391 = vmatpush2.msra.mxu0 0.0
        %392 = vmatprep.subr.mxu0 0.0
        %393 = vmatpush2.msra.mxu0 0.0
        %394 = vmatprep.subr.mxu0 0.0
        %395 = vmatpush2.msra.mxu0 0.0
        %396 = vmatprep.subr.mxu0 0.0
        %397 = vmatpush2.msra.mxu0 0.0
        %398 = vmatprep.subr.mxu0 0.0
        %399 = vmatpush2.msra.mxu0 0.0
        %400 = vmatprep.subr.mxu0 0.0
        %401 = vmatpush2.msra.mxu0 0.0
        %402 = vmatprep.subr.mxu0 0.0
        %403 = vmatpush2.msra.mxu0 0.0
        %404 = vmatprep.mubr.f32.mxu0 0.0
        %v405 = vand.u32 %v212, 4294901760
        %406 = vmatmul.mubr.f32.gmra.mxu0 %v405
        %v407 = vpop.f32.mrf.mxu0
        %v408 = vadd.f32 %v297, %v407
        %v409 = vpop.f32.mrf.mxu0
        %410 = vmatprep.mubr.f32.mxu0 0.0
        %v411 = vand.u32 %v215, 4294901760
        %412 = vmatmul.mubr.f32.gmra.mxu0 %v411
        %v413 = vpop.f32.mrf.mxu0
        %v414 = vadd.f32 %v307, %v413
        %v415 = vpop.f32.mrf.mxu0
        %416 = vmatprep.mubr.f32.mxu0 0.0
        %v417 = vand.u32 %v218, 4294901760
        %418 = vmatmul.mubr.f32.gmra.mxu0 %v417
        %v419 = vpop.f32.mrf.mxu0
        %v420 = vadd.f32 %v317, %v419
        %v421 = vpop.f32.mrf.mxu0
        %422 = vmatprep.mubr.f32.mxu0 0.0
        %v423 = vand.u32 %v221, 4294901760
        %424 = vmatmul.mubr.f32.gmra.mxu0 %v423
        %v425 = vpop.f32.mrf.mxu0
        %v426 = vadd.f32 %v327, %v425
        %v427 = vpop.f32.mrf.mxu0
        %428 = vdwg.mxu0
        %429 = vmatprep.subr.mxu0 0.0
        %430 = vmatpush1.msra.mxu0 0.0
        %431 = vmatprep.subr.mxu0 0.0
        %432 = vmatpush1.msra.mxu0 0.0
        %433 = vmatprep.subr.mxu0 0.0
        %434 = vmatpush1.msra.mxu0 0.0
        %435 = vmatprep.subr.mxu0 0.0
        %436 = vmatpush1.msra.mxu0 0.0
        %437 = vmatprep.subr.mxu0 0.0
        %438 = vmatpush1.msra.mxu0 0.0
        %439 = vmatprep.subr.mxu0 0.0
        %440 = vmatpush1.msra.mxu0 0.0
        %441 = vmatprep.subr.mxu0 0.0
        %442 = vmatpush1.msra.mxu0 0.0
        %443 = vmatprep.subr.mxu0 0.0
        %444 = vmatpush1.msra.mxu0 0.0
        %445 = vmatprep.subr.mxu0 0.0
        %446 = vmatpush1.msra.mxu0 0.0
        %447 = vmatprep.subr.mxu0 0.0
        %448 = vmatpush1.msra.mxu0 0.0
        %449 = vmatprep.subr.mxu0 0.0
        %450 = vmatpush1.msra.mxu0 0.0
        %451 = vmatprep.subr.mxu0 0.0
        %452 = vmatpush1.msra.mxu0 0.0
        %453 = vmatprep.subr.mxu0 0.0
        %454 = vmatpush1.msra.mxu0 0.0
        %455 = vmatprep.subr.mxu0 0.0
        %456 = vmatpush1.msra.mxu0 0.0
        %457 = vmatprep.subr.mxu0 0.0
        %v458 = vand.u32 %v209, 4294901760
        %v459 = vsub.f32 %v209, %v458
        %460 = vmatpush1.msra.mxu0 %v459
        %461 = vmatprep.subr.mxu0 0.0
        %v462 = vand.u32 %v208, 4294901760
        %v463 = vsub.f32 %v208, %v462
        %464 = vmatpush1.msra.mxu0 %v463
        %465 = vmatprep.subr.mxu0 0.0
        %466 = vmatpush2.msra.mxu0 0.0
        %467 = vmatprep.subr.mxu0 0.0
        %468 = vmatpush2.msra.mxu0 0.0
        %469 = vmatprep.subr.mxu0 0.0
        %470 = vmatpush2.msra.mxu0 0.0
        %471 = vmatprep.subr.mxu0 0.0
        %472 = vmatpush2.msra.mxu0 0.0
        %473 = vmatprep.subr.mxu0 0.0
        %474 = vmatpush2.msra.mxu0 0.0
        %475 = vmatprep.subr.mxu0 0.0
        %476 = vmatpush2.msra.mxu0 0.0
        %477 = vmatprep.subr.mxu0 0.0
        %478 = vmatpush2.msra.mxu0 0.0
        %479 = vmatprep.subr.mxu0 0.0
        %480 = vmatpush2.msra.mxu0 0.0
        %481 = vmatprep.subr.mxu0 0.0
        %482 = vmatpush2.msra.mxu0 0.0
        %483 = vmatprep.subr.mxu0 0.0
        %484 = vmatpush2.msra.mxu0 0.0
        %485 = vmatprep.subr.mxu0 0.0
        %486 = vmatpush2.msra.mxu0 0.0
        %487 = vmatprep.subr.mxu0 0.0
        %488 = vmatpush2.msra.mxu0 0.0
        %489 = vmatprep.subr.mxu0 0.0
        %490 = vmatpush2.msra.mxu0 0.0
        %491 = vmatprep.subr.mxu0 0.0
        %492 = vmatpush2.msra.mxu0 0.0
        %493 = vmatprep.subr.mxu0 0.0
        %494 = vmatpush2.msra.mxu0 0.0
        %495 = vmatprep.subr.mxu0 0.0
        %496 = vmatpush2.msra.mxu0 0.0
        %497 = vmatprep.mubr.f32.mxu0 0.0
        %v498 = vand.u32 %v212, 4294901760
        %v499 = vsub.f32 %v212, %v498
        %500 = vmatmul.mubr.f32.gmra.mxu0 %v499
        %v501 = vpop.f32.mrf.mxu0
        %v502 = vadd.f32 %v408, %v501
        %v503 = vpop.f32.mrf.mxu0
        %504 = vmatprep.mubr.f32.mxu0 0.0
        %v505 = vand.u32 %v215, 4294901760
        %v506 = vsub.f32 %v215, %v505
        %507 = vmatmul.mubr.f32.gmra.mxu0 %v506
        %v508 = vpop.f32.mrf.mxu0
        %v509 = vadd.f32 %v414, %v508
        %v510 = vpop.f32.mrf.mxu0
        %511 = vmatprep.mubr.f32.mxu0 0.0
        %v512 = vand.u32 %v218, 4294901760
        %v513 = vsub.f32 %v218, %v512
        %514 = vmatmul.mubr.f32.gmra.mxu0 %v513
        %v515 = vpop.f32.mrf.mxu0
        %v516 = vadd.f32 %v420, %v515
        %v517 = vpop.f32.mrf.mxu0
        %518 = vmatprep.mubr.f32.mxu0 0.0
        %v519 = vand.u32 %v221, 4294901760
        %v520 = vsub.f32 %v221, %v519
        %521 = vmatmul.mubr.f32.gmra.mxu0 %v520
        %v522 = vpop.f32.mrf.mxu0
        %v523 = vadd.f32 %v426, %v522
        %v524 = vpop.f32.mrf.mxu0
        %525 = vdwg.mxu0
        %526 = vmatprep.subr.mxu0 0.0
        %527 = vmatpush1.msra.mxu0 0.0
        %528 = vmatprep.subr.mxu0 0.0
        %529 = vmatpush1.msra.mxu0 0.0
        %530 = vmatprep.subr.mxu0 0.0
        %531 = vmatpush1.msra.mxu0 0.0
        %532 = vmatprep.subr.mxu0 0.0
        %533 = vmatpush1.msra.mxu0 0.0
        %534 = vmatprep.subr.mxu0 0.0
        %535 = vmatpush1.msra.mxu0 0.0
        %536 = vmatprep.subr.mxu0 0.0
        %537 = vmatpush1.msra.mxu0 0.0
        %538 = vmatprep.subr.mxu0 0.0
        %539 = vmatpush1.msra.mxu0 0.0
        %540 = vmatprep.subr.mxu0 0.0
        %541 = vmatpush1.msra.mxu0 0.0
        %542 = vmatprep.subr.mxu0 0.0
        %543 = vmatpush1.msra.mxu0 0.0
        %544 = vmatprep.subr.mxu0 0.0
        %545 = vmatpush1.msra.mxu0 0.0
        %546 = vmatprep.subr.mxu0 0.0
        %547 = vmatpush1.msra.mxu0 0.0
        %548 = vmatprep.subr.mxu0 0.0
        %549 = vmatpush1.msra.mxu0 0.0
        %550 = vmatprep.subr.mxu0 0.0
        %551 = vmatpush1.msra.mxu0 0.0
        %552 = vmatprep.subr.mxu0 0.0
        %553 = vmatpush1.msra.mxu0 0.0
        %554 = vmatprep.subr.mxu0 0.0
        %v555 = vand.u32 %v209, 4294901760
        %556 = vmatpush1.msra.mxu0 %v555
        %557 = vmatprep.subr.mxu0 0.0
        %v558 = vand.u32 %v208, 4294901760
        %559 = vmatpush1.msra.mxu0 %v558
        %560 = vmatprep.subr.mxu0 0.0
        %561 = vmatpush2.msra.mxu0 0.0
        %562 = vmatprep.subr.mxu0 0.0
        %563 = vmatpush2.msra.mxu0 0.0
        %564 = vmatprep.subr.mxu0 0.0
        %565 = vmatpush2.msra.mxu0 0.0
        %566 = vmatprep.subr.mxu0 0.0
        %567 = vmatpush2.msra.mxu0 0.0
        %568 = vmatprep.subr.mxu0 0.0
        %569 = vmatpush2.msra.mxu0 0.0
        %570 = vmatprep.subr.mxu0 0.0
        %571 = vmatpush2.msra.mxu0 0.0
        %572 = vmatprep.subr.mxu0 0.0
        %573 = vmatpush2.msra.mxu0 0.0
        %574 = vmatprep.subr.mxu0 0.0
        %575 = vmatpush2.msra.mxu0 0.0
        %576 = vmatprep.subr.mxu0 0.0
        %577 = vmatpush2.msra.mxu0 0.0
        %578 = vmatprep.subr.mxu0 0.0
        %579 = vmatpush2.msra.mxu0 0.0
        %580 = vmatprep.subr.mxu0 0.0
        %581 = vmatpush2.msra.mxu0 0.0
        %582 = vmatprep.subr.mxu0 0.0
        %583 = vmatpush2.msra.mxu0 0.0
        %584 = vmatprep.subr.mxu0 0.0
        %585 = vmatpush2.msra.mxu0 0.0
        %586 = vmatprep.subr.mxu0 0.0
        %587 = vmatpush2.msra.mxu0 0.0
        %588 = vmatprep.subr.mxu0 0.0
        %589 = vmatpush2.msra.mxu0 0.0
        %590 = vmatprep.subr.mxu0 0.0
        %591 = vmatpush2.msra.mxu0 0.0
        %592 = vmatprep.mubr.f32.mxu0 0.0
        %v593 = vand.u32 %v212, 4294901760
        %v594 = vsub.f32 %v212, %v593
        %v595 = vand.u32 %v594, 4294901760
        %596 = vmatmul.mubr.f32.gmra.mxu0 %v595
        %v597 = vpop.f32.mrf.mxu0
        %v598 = vadd.f32 %v502, %v597
        %v599 = vpop.f32.mrf.mxu0
        %600 = vmatprep.mubr.f32.mxu0 0.0
        %v601 = vand.u32 %v215, 4294901760
        %v602 = vsub.f32 %v215, %v601
        %v603 = vand.u32 %v602, 4294901760
        %604 = vmatmul.mubr.f32.gmra.mxu0 %v603
        %v605 = vpop.f32.mrf.mxu0
        %v606 = vadd.f32 %v509, %v605
        %v607 = vpop.f32.mrf.mxu0
        %608 = vmatprep.mubr.f32.mxu0 0.0
        %v609 = vand.u32 %v218, 4294901760
        %v610 = vsub.f32 %v218, %v609
        %v611 = vand.u32 %v610, 4294901760
        %612 = vmatmul.mubr.f32.gmra.mxu0 %v611
        %v613 = vpop.f32.mrf.mxu0
        %v614 = vadd.f32 %v516, %v613
        %v615 = vpop.f32.mrf.mxu0
        %616 = vmatprep.mubr.f32.mxu0 0.0
        %v617 = vand.u32 %v221, 4294901760
        %v618 = vsub.f32 %v221, %v617
        %v619 = vand.u32 %v618, 4294901760
        %620 = vmatmul.mubr.f32.gmra.mxu0 %v619
        %v621 = vpop.f32.mrf.mxu0
        %v622 = vadd.f32 %v523, %v621
        %v623 = vpop.f32.mrf.mxu0
        %624 = vdwg.mxu0
        %625 = vmatprep.subr.mxu0 0.0
        %626 = vmatpush1.msra.mxu0 0.0
        %627 = vmatprep.subr.mxu0 0.0
        %628 = vmatpush1.msra.mxu0 0.0
        %629 = vmatprep.subr.mxu0 0.0
        %630 = vmatpush1.msra.mxu0 0.0
        %631 = vmatprep.subr.mxu0 0.0
        %632 = vmatpush1.msra.mxu0 0.0
        %633 = vmatprep.subr.mxu0 0.0
        %634 = vmatpush1.msra.mxu0 0.0
        %635 = vmatprep.subr.mxu0 0.0
        %636 = vmatpush1.msra.mxu0 0.0
        %637 = vmatprep.subr.mxu0 0.0
        %638 = vmatpush1.msra.mxu0 0.0
        %639 = vmatprep.subr.mxu0 0.0
        %640 = vmatpush1.msra.mxu0 0.0
        %641 = vmatprep.subr.mxu0 0.0
        %642 = vmatpush1.msra.mxu0 0.0
        %643 = vmatprep.subr.mxu0 0.0
        %644 = vmatpush1.msra.mxu0 0.0
        %645 = vmatprep.subr.mxu0 0.0
        %646 = vmatpush1.msra.mxu0 0.0
        %647 = vmatprep.subr.mxu0 0.0
        %648 = vmatpush1.msra.mxu0 0.0
        %649 = vmatprep.subr.mxu0 0.0
        %650 = vmatpush1.msra.mxu0 0.0
        %651 = vmatprep.subr.mxu0 0.0
        %652 = vmatpush1.msra.mxu0 0.0
        %653 = vmatprep.subr.mxu0 0.0
        %v654 = vand.u32 %v209, 4294901760
        %v655 = vsub.f32 %v209, %v654
        %v656 = vand.u32 %v655, 4294901760
        %657 = vmatpush1.msra.mxu0 %v656
        %658 = vmatprep.subr.mxu0 0.0
        %v659 = vand.u32 %v208, 4294901760
        %v660 = vsub.f32 %v208, %v659
        %v661 = vand.u32 %v660, 4294901760
        %662 = vmatpush1.msra.mxu0 %v661
        %663 = vmatprep.subr.mxu0 0.0
        %664 = vmatpush2.msra.mxu0 0.0
        %665 = vmatprep.subr.mxu0 0.0
        %666 = vmatpush2.msra.mxu0 0.0
        %667 = vmatprep.subr.mxu0 0.0
        %668 = vmatpush2.msra.mxu0 0.0
        %669 = vmatprep.subr.mxu0 0.0
        %670 = vmatpush2.msra.mxu0 0.0
        %671 = vmatprep.subr.mxu0 0.0
        %672 = vmatpush2.msra.mxu0 0.0
        %673 = vmatprep.subr.mxu0 0.0
        %674 = vmatpush2.msra.mxu0 0.0
        %675 = vmatprep.subr.mxu0 0.0
        %676 = vmatpush2.msra.mxu0 0.0
        %677 = vmatprep.subr.mxu0 0.0
        %678 = vmatpush2.msra.mxu0 0.0
        %679 = vmatprep.subr.mxu0 0.0
        %680 = vmatpush2.msra.mxu0 0.0
        %681 = vmatprep.subr.mxu0 0.0
        %682 = vmatpush2.msra.mxu0 0.0
        %683 = vmatprep.subr.mxu0 0.0
        %684 = vmatpush2.msra.mxu0 0.0
        %685 = vmatprep.subr.mxu0 0.0
        %686 = vmatpush2.msra.mxu0 0.0
        %687 = vmatprep.subr.mxu0 0.0
        %688 = vmatpush2.msra.mxu0 0.0
        %689 = vmatprep.subr.mxu0 0.0
        %690 = vmatpush2.msra.mxu0 0.0
        %691 = vmatprep.subr.mxu0 0.0
        %692 = vmatpush2.msra.mxu0 0.0
        %693 = vmatprep.subr.mxu0 0.0
        %694 = vmatpush2.msra.mxu0 0.0
        %695 = vmatprep.mubr.f32.mxu0 0.0
        %v696 = vand.u32 %v212, 4294901760
        %697 = vmatmul.mubr.f32.gmra.mxu0 %v696
        %v698 = vpop.f32.mrf.mxu0
        %v699 = vadd.f32 %v598, %v698
        %v700 = vpop.f32.mrf.mxu0
        %701 = vmatprep.mubr.f32.mxu0 0.0
        %v702 = vand.u32 %v215, 4294901760
        %703 = vmatmul.mubr.f32.gmra.mxu0 %v702
        %v704 = vpop.f32.mrf.mxu0
        %v705 = vadd.f32 %v606, %v704
        %v706 = vpop.f32.mrf.mxu0
        %707 = vmatprep.mubr.f32.mxu0 0.0
        %v708 = vand.u32 %v218, 4294901760
        %709 = vmatmul.mubr.f32.gmra.mxu0 %v708
        %v710 = vpop.f32.mrf.mxu0
        %v711 = vadd.f32 %v614, %v710
        %v712 = vpop.f32.mrf.mxu0
        %713 = vmatprep.mubr.f32.mxu0 0.0
        %v714 = vand.u32 %v221, 4294901760
        %715 = vmatmul.mubr.f32.gmra.mxu0 %v714
        %v716 = vpop.f32.mrf.mxu0
        %v717 = vadd.f32 %v622, %v716
        %v718 = vpop.f32.mrf.mxu0
        %719 = vdwg.mxu0
        %720 = vmatprep.subr.mxu0 0.0
        %721 = vmatpush1.msra.mxu0 0.0
        %722 = vmatprep.subr.mxu0 0.0
        %723 = vmatpush1.msra.mxu0 0.0
        %724 = vmatprep.subr.mxu0 0.0
        %725 = vmatpush1.msra.mxu0 0.0
        %726 = vmatprep.subr.mxu0 0.0
        %727 = vmatpush1.msra.mxu0 0.0
        %728 = vmatprep.subr.mxu0 0.0
        %729 = vmatpush1.msra.mxu0 0.0
        %730 = vmatprep.subr.mxu0 0.0
        %731 = vmatpush1.msra.mxu0 0.0
        %732 = vmatprep.subr.mxu0 0.0
        %733 = vmatpush1.msra.mxu0 0.0
        %734 = vmatprep.subr.mxu0 0.0
        %735 = vmatpush1.msra.mxu0 0.0
        %736 = vmatprep.subr.mxu0 0.0
        %737 = vmatpush1.msra.mxu0 0.0
        %738 = vmatprep.subr.mxu0 0.0
        %739 = vmatpush1.msra.mxu0 0.0
        %740 = vmatprep.subr.mxu0 0.0
        %741 = vmatpush1.msra.mxu0 0.0
        %742 = vmatprep.subr.mxu0 0.0
        %743 = vmatpush1.msra.mxu0 0.0
        %744 = vmatprep.subr.mxu0 0.0
        %745 = vmatpush1.msra.mxu0 0.0
        %746 = vmatprep.subr.mxu0 0.0
        %747 = vmatpush1.msra.mxu0 0.0
        %748 = vmatprep.subr.mxu0 0.0
        %v749 = vand.u32 %v209, 4294901760
        %750 = vmatpush1.msra.mxu0 %v749
        %751 = vmatprep.subr.mxu0 0.0
        %v752 = vand.u32 %v208, 4294901760
        %753 = vmatpush1.msra.mxu0 %v752
        %754 = vmatprep.subr.mxu0 0.0
        %755 = vmatpush2.msra.mxu0 0.0
        %756 = vmatprep.subr.mxu0 0.0
        %757 = vmatpush2.msra.mxu0 0.0
        %758 = vmatprep.subr.mxu0 0.0
        %759 = vmatpush2.msra.mxu0 0.0
        %760 = vmatprep.subr.mxu0 0.0
        %761 = vmatpush2.msra.mxu0 0.0
        %762 = vmatprep.subr.mxu0 0.0
        %763 = vmatpush2.msra.mxu0 0.0
        %764 = vmatprep.subr.mxu0 0.0
        %765 = vmatpush2.msra.mxu0 0.0
        %766 = vmatprep.subr.mxu0 0.0
        %767 = vmatpush2.msra.mxu0 0.0
        %768 = vmatprep.subr.mxu0 0.0
        %769 = vmatpush2.msra.mxu0 0.0
        %770 = vmatprep.subr.mxu0 0.0
        %771 = vmatpush2.msra.mxu0 0.0
        %772 = vmatprep.subr.mxu0 0.0
        %773 = vmatpush2.msra.mxu0 0.0
        %774 = vmatprep.subr.mxu0 0.0
        %775 = vmatpush2.msra.mxu0 0.0
        %776 = vmatprep.subr.mxu0 0.0
        %777 = vmatpush2.msra.mxu0 0.0
        %778 = vmatprep.subr.mxu0 0.0
        %779 = vmatpush2.msra.mxu0 0.0
        %780 = vmatprep.subr.mxu0 0.0
        %781 = vmatpush2.msra.mxu0 0.0
        %782 = vmatprep.subr.mxu0 0.0
        %783 = vmatpush2.msra.mxu0 0.0
        %784 = vmatprep.subr.mxu0 0.0
        %785 = vmatpush2.msra.mxu0 0.0
        %786 = vmatprep.mubr.f32.mxu0 0.0
        %v787 = vand.u32 %v212, 4294901760
        %788 = vmatmul.mubr.f32.gmra.mxu0 %v787
        %v789 = vpop.f32.mrf.mxu0
        %v790 = vadd.f32 %v699, %v789
        %v791 = vpop.f32.mrf.mxu0
        %792 = vmatprep.mubr.f32.mxu0 0.0
        %v793 = vand.u32 %v215, 4294901760
        %794 = vmatmul.mubr.f32.gmra.mxu0 %v793
        %v795 = vpop.f32.mrf.mxu0
        %v796 = vadd.f32 %v705, %v795
        %v797 = vpop.f32.mrf.mxu0
        %798 = vmatprep.mubr.f32.mxu0 0.0
        %v799 = vand.u32 %v218, 4294901760
        %800 = vmatmul.mubr.f32.gmra.mxu0 %v799
        %v801 = vpop.f32.mrf.mxu0
        %v802 = vadd.f32 %v711, %v801
        %v803 = vpop.f32.mrf.mxu0
        %804 = vmatprep.mubr.f32.mxu0 0.0
        %v805 = vand.u32 %v221, 4294901760
        %806 = vmatmul.mubr.f32.gmra.mxu0 %v805
        %v807 = vpop.f32.mrf.mxu0
        %v808 = vadd.f32 %v717, %v807
        %v809 = vpop.f32.mrf.mxu0
        %810 = vdwg.mxu0
        %s811 = scalar_lea.vmem %s2, 1
        %v812 = vld [vmem:[%s811] sm:$0x1]
        %vm813 = vcmp.ne.f32.partialorder %v812, 0.0
        %v814 = vsel %vm813, 1, 0
        %v815 = vlaneseq
        %v816 = vshrl.u32 %v815, 7
        %v817 = vsub.s32 0, %v816
        %v818 = vrot.slane %v814, %v817
        %vm819 = vcmp.eq.s32.totalorder %v818, 1
        %v820 = vsel %vm819, %v192, 0.0
        %v821 = vsel %vm819, %v193, 0.0
        %v822 = vsel %vm819, %v194, 0.0
        %v823 = vsel %vm819, %v195, 0.0
        %s824 = scalar_lea.vmem %s1, 16
        %v825 = vld [vmem:[%s824] sm:$0xff]
        %v826 = vld [vmem:[%s824 + $0x8] sm:$0xff]
        %v828 = vsel %vm210, %v820, 0
        %v831 = vsel %vm210, %v821, 0
        %v834 = vsel %vm210, %v822, 0
        %v837 = vsel %vm210, %v823, 0
        %839 = vmatprep.subr.mxu0 0.0
        %840 = vmatpush1.msra.mxu0 0.0
        %841 = vmatprep.subr.mxu0 0.0
        %842 = vmatpush1.msra.mxu0 0.0
        %843 = vmatprep.subr.mxu0 0.0
        %844 = vmatpush1.msra.mxu0 0.0
        %845 = vmatprep.subr.mxu0 0.0
        %846 = vmatpush1.msra.mxu0 0.0
        %847 = vmatprep.subr.mxu0 0.0
        %848 = vmatpush1.msra.mxu0 0.0
        %849 = vmatprep.subr.mxu0 0.0
        %850 = vmatpush1.msra.mxu0 0.0
        %851 = vmatprep.subr.mxu0 0.0
        %852 = vmatpush1.msra.mxu0 0.0
        %853 = vmatprep.subr.mxu0 0.0
        %854 = vmatpush1.msra.mxu0 0.0
        %855 = vmatprep.subr.mxu0 0.0
        %856 = vmatpush1.msra.mxu0 0.0
        %857 = vmatprep.subr.mxu0 0.0
        %858 = vmatpush1.msra.mxu0 0.0
        %859 = vmatprep.subr.mxu0 0.0
        %860 = vmatpush1.msra.mxu0 0.0
        %861 = vmatprep.subr.mxu0 0.0
        %862 = vmatpush1.msra.mxu0 0.0
        %863 = vmatprep.subr.mxu0 0.0
        %864 = vmatpush1.msra.mxu0 0.0
        %865 = vmatprep.subr.mxu0 0.0
        %866 = vmatpush1.msra.mxu0 0.0
        %867 = vmatprep.subr.mxu0 0.0
        %v868 = vand.u32 %v826, 4294901760
        %869 = vmatpush1.msra.mxu0 %v868
        %870 = vmatprep.subr.mxu0 0.0
        %v871 = vand.u32 %v825, 4294901760
        %872 = vmatpush1.msra.mxu0 %v871
        %873 = vmatprep.subr.mxu0 0.0
        %874 = vmatpush2.msra.mxu0 0.0
        %875 = vmatprep.subr.mxu0 0.0
        %876 = vmatpush2.msra.mxu0 0.0
        %877 = vmatprep.subr.mxu0 0.0
        %878 = vmatpush2.msra.mxu0 0.0
        %879 = vmatprep.subr.mxu0 0.0
        %880 = vmatpush2.msra.mxu0 0.0
        %881 = vmatprep.subr.mxu0 0.0
        %882 = vmatpush2.msra.mxu0 0.0
        %883 = vmatprep.subr.mxu0 0.0
        %884 = vmatpush2.msra.mxu0 0.0
        %885 = vmatprep.subr.mxu0 0.0
        %886 = vmatpush2.msra.mxu0 0.0
        %887 = vmatprep.subr.mxu0 0.0
        %888 = vmatpush2.msra.mxu0 0.0
        %889 = vmatprep.subr.mxu0 0.0
        %890 = vmatpush2.msra.mxu0 0.0
        %891 = vmatprep.subr.mxu0 0.0
        %892 = vmatpush2.msra.mxu0 0.0
        %893 = vmatprep.subr.mxu0 0.0
        %894 = vmatpush2.msra.mxu0 0.0
        %895 = vmatprep.subr.mxu0 0.0
        %896 = vmatpush2.msra.mxu0 0.0
        %897 = vmatprep.subr.mxu0 0.0
        %898 = vmatpush2.msra.mxu0 0.0
        %899 = vmatprep.subr.mxu0 0.0
        %900 = vmatpush2.msra.mxu0 0.0
        %901 = vmatprep.subr.mxu0 0.0
        %902 = vmatpush2.msra.mxu0 0.0
        %903 = vmatprep.subr.mxu0 0.0
        %904 = vmatpush2.msra.mxu0 0.0
        %905 = vmatprep.mubr.f32.mxu0 0.0
        %v906 = vand.u32 %v828, 4294901760
        %v907 = vsub.f32 %v828, %v906
        %v908 = vand.u32 %v907, 4294901760
        %v909 = vsub.f32 %v907, %v908
        %v910 = vand.u32 %v909, 4294901760
        %911 = vmatmul.mubr.f32.gmra.mxu0 %v910
        %v912 = vpop.f32.mrf.mxu0
        %v913 = vadd.f32 0.0, %v912
        %v914 = vpop.f32.mrf.mxu0
        %915 = vmatprep.mubr.f32.mxu0 0.0
        %v916 = vand.u32 %v831, 4294901760
        %v917 = vsub.f32 %v831, %v916
        %v918 = vand.u32 %v917, 4294901760
        %v919 = vsub.f32 %v917, %v918
        %v920 = vand.u32 %v919, 4294901760
        %921 = vmatmul.mubr.f32.gmra.mxu0 %v920
        %v922 = vpop.f32.mrf.mxu0
        %v923 = vadd.f32 0.0, %v922
        %v924 = vpop.f32.mrf.mxu0
        %925 = vmatprep.mubr.f32.mxu0 0.0
        %v926 = vand.u32 %v834, 4294901760
        %v927 = vsub.f32 %v834, %v926
        %v928 = vand.u32 %v927, 4294901760
        %v929 = vsub.f32 %v927, %v928
        %v930 = vand.u32 %v929, 4294901760
        %931 = vmatmul.mubr.f32.gmra.mxu0 %v930
        %v932 = vpop.f32.mrf.mxu0
        %v933 = vadd.f32 0.0, %v932
        %v934 = vpop.f32.mrf.mxu0
        %935 = vmatprep.mubr.f32.mxu0 0.0
        %v936 = vand.u32 %v837, 4294901760
        %v937 = vsub.f32 %v837, %v936
        %v938 = vand.u32 %v937, 4294901760
        %v939 = vsub.f32 %v937, %v938
        %v940 = vand.u32 %v939, 4294901760
        %941 = vmatmul.mubr.f32.gmra.mxu0 %v940
        %v942 = vpop.f32.mrf.mxu0
        %v943 = vadd.f32 0.0, %v942
        %v944 = vpop.f32.mrf.mxu0
        %945 = vdwg.mxu0
        %946 = vmatprep.subr.mxu0 0.0
        %947 = vmatpush1.msra.mxu0 0.0
        %948 = vmatprep.subr.mxu0 0.0
        %949 = vmatpush1.msra.mxu0 0.0
        %950 = vmatprep.subr.mxu0 0.0
        %951 = vmatpush1.msra.mxu0 0.0
        %952 = vmatprep.subr.mxu0 0.0
        %953 = vmatpush1.msra.mxu0 0.0
        %954 = vmatprep.subr.mxu0 0.0
        %955 = vmatpush1.msra.mxu0 0.0
        %956 = vmatprep.subr.mxu0 0.0
        %957 = vmatpush1.msra.mxu0 0.0
        %958 = vmatprep.subr.mxu0 0.0
        %959 = vmatpush1.msra.mxu0 0.0
        %960 = vmatprep.subr.mxu0 0.0
        %961 = vmatpush1.msra.mxu0 0.0
        %962 = vmatprep.subr.mxu0 0.0
        %963 = vmatpush1.msra.mxu0 0.0
        %964 = vmatprep.subr.mxu0 0.0
        %965 = vmatpush1.msra.mxu0 0.0
        %966 = vmatprep.subr.mxu0 0.0
        %967 = vmatpush1.msra.mxu0 0.0
        %968 = vmatprep.subr.mxu0 0.0
        %969 = vmatpush1.msra.mxu0 0.0
        %970 = vmatprep.subr.mxu0 0.0
        %971 = vmatpush1.msra.mxu0 0.0
        %972 = vmatprep.subr.mxu0 0.0
        %973 = vmatpush1.msra.mxu0 0.0
        %974 = vmatprep.subr.mxu0 0.0
        %v975 = vand.u32 %v826, 4294901760
        %v976 = vsub.f32 %v826, %v975
        %v977 = vand.u32 %v976, 4294901760
        %v978 = vsub.f32 %v976, %v977
        %v979 = vand.u32 %v978, 4294901760
        %980 = vmatpush1.msra.mxu0 %v979
        %981 = vmatprep.subr.mxu0 0.0
        %v982 = vand.u32 %v825, 4294901760
        %v983 = vsub.f32 %v825, %v982
        %v984 = vand.u32 %v983, 4294901760
        %v985 = vsub.f32 %v983, %v984
        %v986 = vand.u32 %v985, 4294901760
        %987 = vmatpush1.msra.mxu0 %v986
        %988 = vmatprep.subr.mxu0 0.0
        %989 = vmatpush2.msra.mxu0 0.0
        %990 = vmatprep.subr.mxu0 0.0
        %991 = vmatpush2.msra.mxu0 0.0
        %992 = vmatprep.subr.mxu0 0.0
        %993 = vmatpush2.msra.mxu0 0.0
        %994 = vmatprep.subr.mxu0 0.0
        %995 = vmatpush2.msra.mxu0 0.0
        %996 = vmatprep.subr.mxu0 0.0
        %997 = vmatpush2.msra.mxu0 0.0
        %998 = vmatprep.subr.mxu0 0.0
        %999 = vmatpush2.msra.mxu0 0.0
        %1000 = vmatprep.subr.mxu0 0.0
        %1001 = vmatpush2.msra.mxu0 0.0
        %1002 = vmatprep.subr.mxu0 0.0
        %1003 = vmatpush2.msra.mxu0 0.0
        %1004 = vmatprep.subr.mxu0 0.0
        %1005 = vmatpush2.msra.mxu0 0.0
        %1006 = vmatprep.subr.mxu0 0.0
        %1007 = vmatpush2.msra.mxu0 0.0
        %1008 = vmatprep.subr.mxu0 0.0
        %1009 = vmatpush2.msra.mxu0 0.0
        %1010 = vmatprep.subr.mxu0 0.0
        %1011 = vmatpush2.msra.mxu0 0.0
        %1012 = vmatprep.subr.mxu0 0.0
        %1013 = vmatpush2.msra.mxu0 0.0
        %1014 = vmatprep.subr.mxu0 0.0
        %1015 = vmatpush2.msra.mxu0 0.0
        %1016 = vmatprep.subr.mxu0 0.0
        %1017 = vmatpush2.msra.mxu0 0.0
        %1018 = vmatprep.subr.mxu0 0.0
        %1019 = vmatpush2.msra.mxu0 0.0
        %1020 = vmatprep.mubr.f32.mxu0 0.0
        %v1021 = vand.u32 %v828, 4294901760
        %1022 = vmatmul.mubr.f32.gmra.mxu0 %v1021
        %v1023 = vpop.f32.mrf.mxu0
        %v1024 = vadd.f32 %v913, %v1023
        %v1025 = vpop.f32.mrf.mxu0
        %1026 = vmatprep.mubr.f32.mxu0 0.0
        %v1027 = vand.u32 %v831, 4294901760
        %1028 = vmatmul.mubr.f32.gmra.mxu0 %v1027
        %v1029 = vpop.f32.mrf.mxu0
        %v1030 = vadd.f32 %v923, %v1029
        %v1031 = vpop.f32.mrf.mxu0
        %1032 = vmatprep.mubr.f32.mxu0 0.0
        %v1033 = vand.u32 %v834, 4294901760
        %1034 = vmatmul.mubr.f32.gmra.mxu0 %v1033
        %v1035 = vpop.f32.mrf.mxu0
        %v1036 = vadd.f32 %v933, %v1035
        %v1037 = vpop.f32.mrf.mxu0
        %1038 = vmatprep.mubr.f32.mxu0 0.0
        %v1039 = vand.u32 %v837, 4294901760
        %1040 = vmatmul.mubr.f32.gmra.mxu0 %v1039
        %v1041 = vpop.f32.mrf.mxu0
        %v1042 = vadd.f32 %v943, %v1041
        %v1043 = vpop.f32.mrf.mxu0
        %1044 = vdwg.mxu0
        %1045 = vmatprep.subr.mxu0 0.0
        %1046 = vmatpush1.msra.mxu0 0.0
        %1047 = vmatprep.subr.mxu0 0.0
        %1048 = vmatpush1.msra.mxu0 0.0
        %1049 = vmatprep.subr.mxu0 0.0
        %1050 = vmatpush1.msra.mxu0 0.0
        %1051 = vmatprep.subr.mxu0 0.0
        %1052 = vmatpush1.msra.mxu0 0.0
        %1053 = vmatprep.subr.mxu0 0.0
        %1054 = vmatpush1.msra.mxu0 0.0
        %1055 = vmatprep.subr.mxu0 0.0
        %1056 = vmatpush1.msra.mxu0 0.0
        %1057 = vmatprep.subr.mxu0 0.0
        %1058 = vmatpush1.msra.mxu0 0.0
        %1059 = vmatprep.subr.mxu0 0.0
        %1060 = vmatpush1.msra.mxu0 0.0
        %1061 = vmatprep.subr.mxu0 0.0
        %1062 = vmatpush1.msra.mxu0 0.0
        %1063 = vmatprep.subr.mxu0 0.0
        %1064 = vmatpush1.msra.mxu0 0.0
        %1065 = vmatprep.subr.mxu0 0.0
        %1066 = vmatpush1.msra.mxu0 0.0
        %1067 = vmatprep.subr.mxu0 0.0
        %1068 = vmatpush1.msra.mxu0 0.0
        %1069 = vmatprep.subr.mxu0 0.0
        %1070 = vmatpush1.msra.mxu0 0.0
        %1071 = vmatprep.subr.mxu0 0.0
        %1072 = vmatpush1.msra.mxu0 0.0
        %1073 = vmatprep.subr.mxu0 0.0
        %v1074 = vand.u32 %v826, 4294901760
        %v1075 = vsub.f32 %v826, %v1074
        %1076 = vmatpush1.msra.mxu0 %v1075
        %1077 = vmatprep.subr.mxu0 0.0
        %v1078 = vand.u32 %v825, 4294901760
        %v1079 = vsub.f32 %v825, %v1078
        %1080 = vmatpush1.msra.mxu0 %v1079
        %1081 = vmatprep.subr.mxu0 0.0
        %1082 = vmatpush2.msra.mxu0 0.0
        %1083 = vmatprep.subr.mxu0 0.0
        %1084 = vmatpush2.msra.mxu0 0.0
        %1085 = vmatprep.subr.mxu0 0.0
        %1086 = vmatpush2.msra.mxu0 0.0
        %1087 = vmatprep.subr.mxu0 0.0
        %1088 = vmatpush2.msra.mxu0 0.0
        %1089 = vmatprep.subr.mxu0 0.0
        %1090 = vmatpush2.msra.mxu0 0.0
        %1091 = vmatprep.subr.mxu0 0.0
        %1092 = vmatpush2.msra.mxu0 0.0
        %1093 = vmatprep.subr.mxu0 0.0
        %1094 = vmatpush2.msra.mxu0 0.0
        %1095 = vmatprep.subr.mxu0 0.0
        %1096 = vmatpush2.msra.mxu0 0.0
        %1097 = vmatprep.subr.mxu0 0.0
        %1098 = vmatpush2.msra.mxu0 0.0
        %1099 = vmatprep.subr.mxu0 0.0
        %1100 = vmatpush2.msra.mxu0 0.0
        %1101 = vmatprep.subr.mxu0 0.0
        %1102 = vmatpush2.msra.mxu0 0.0
        %1103 = vmatprep.subr.mxu0 0.0
        %1104 = vmatpush2.msra.mxu0 0.0
        %1105 = vmatprep.subr.mxu0 0.0
        %1106 = vmatpush2.msra.mxu0 0.0
        %1107 = vmatprep.subr.mxu0 0.0
        %1108 = vmatpush2.msra.mxu0 0.0
        %1109 = vmatprep.subr.mxu0 0.0
        %1110 = vmatpush2.msra.mxu0 0.0
        %1111 = vmatprep.subr.mxu0 0.0
        %1112 = vmatpush2.msra.mxu0 0.0
        %1113 = vmatprep.mubr.f32.mxu0 0.0
        %v1114 = vand.u32 %v828, 4294901760
        %v1115 = vsub.f32 %v828, %v1114
        %1116 = vmatmul.mubr.f32.gmra.mxu0 %v1115
        %v1117 = vpop.f32.mrf.mxu0
        %v1118 = vadd.f32 %v1024, %v1117
        %v1119 = vpop.f32.mrf.mxu0
        %1120 = vmatprep.mubr.f32.mxu0 0.0
        %v1121 = vand.u32 %v831, 4294901760
        %v1122 = vsub.f32 %v831, %v1121
        %1123 = vmatmul.mubr.f32.gmra.mxu0 %v1122
        %v1124 = vpop.f32.mrf.mxu0
        %v1125 = vadd.f32 %v1030, %v1124
        %v1126 = vpop.f32.mrf.mxu0
        %1127 = vmatprep.mubr.f32.mxu0 0.0
        %v1128 = vand.u32 %v834, 4294901760
        %v1129 = vsub.f32 %v834, %v1128
        %1130 = vmatmul.mubr.f32.gmra.mxu0 %v1129
        %v1131 = vpop.f32.mrf.mxu0
        %v1132 = vadd.f32 %v1036, %v1131
        %v1133 = vpop.f32.mrf.mxu0
        %1134 = vmatprep.mubr.f32.mxu0 0.0
        %v1135 = vand.u32 %v837, 4294901760
        %v1136 = vsub.f32 %v837, %v1135
        %1137 = vmatmul.mubr.f32.gmra.mxu0 %v1136
        %v1138 = vpop.f32.mrf.mxu0
        %v1139 = vadd.f32 %v1042, %v1138
        %v1140 = vpop.f32.mrf.mxu0
        %1141 = vdwg.mxu0
        %1142 = vmatprep.subr.mxu0 0.0
        %1143 = vmatpush1.msra.mxu0 0.0
        %1144 = vmatprep.subr.mxu0 0.0
        %1145 = vmatpush1.msra.mxu0 0.0
        %1146 = vmatprep.subr.mxu0 0.0
        %1147 = vmatpush1.msra.mxu0 0.0
        %1148 = vmatprep.subr.mxu0 0.0
        %1149 = vmatpush1.msra.mxu0 0.0
        %1150 = vmatprep.subr.mxu0 0.0
        %1151 = vmatpush1.msra.mxu0 0.0
        %1152 = vmatprep.subr.mxu0 0.0
        %1153 = vmatpush1.msra.mxu0 0.0
        %1154 = vmatprep.subr.mxu0 0.0
        %1155 = vmatpush1.msra.mxu0 0.0
        %1156 = vmatprep.subr.mxu0 0.0
        %1157 = vmatpush1.msra.mxu0 0.0
        %1158 = vmatprep.subr.mxu0 0.0
        %1159 = vmatpush1.msra.mxu0 0.0
        %1160 = vmatprep.subr.mxu0 0.0
        %1161 = vmatpush1.msra.mxu0 0.0
        %1162 = vmatprep.subr.mxu0 0.0
        %1163 = vmatpush1.msra.mxu0 0.0
        %1164 = vmatprep.subr.mxu0 0.0
        %1165 = vmatpush1.msra.mxu0 0.0
        %1166 = vmatprep.subr.mxu0 0.0
        %1167 = vmatpush1.msra.mxu0 0.0
        %1168 = vmatprep.subr.mxu0 0.0
        %1169 = vmatpush1.msra.mxu0 0.0
        %1170 = vmatprep.subr.mxu0 0.0
        %v1171 = vand.u32 %v826, 4294901760
        %1172 = vmatpush1.msra.mxu0 %v1171
        %1173 = vmatprep.subr.mxu0 0.0
        %v1174 = vand.u32 %v825, 4294901760
        %1175 = vmatpush1.msra.mxu0 %v1174
        %1176 = vmatprep.subr.mxu0 0.0
        %1177 = vmatpush2.msra.mxu0 0.0
        %1178 = vmatprep.subr.mxu0 0.0
        %1179 = vmatpush2.msra.mxu0 0.0
        %1180 = vmatprep.subr.mxu0 0.0
        %1181 = vmatpush2.msra.mxu0 0.0
        %1182 = vmatprep.subr.mxu0 0.0
        %1183 = vmatpush2.msra.mxu0 0.0
        %1184 = vmatprep.subr.mxu0 0.0
        %1185 = vmatpush2.msra.mxu0 0.0
        %1186 = vmatprep.subr.mxu0 0.0
        %1187 = vmatpush2.msra.mxu0 0.0
        %1188 = vmatprep.subr.mxu0 0.0
        %1189 = vmatpush2.msra.mxu0 0.0
        %1190 = vmatprep.subr.mxu0 0.0
        %1191 = vmatpush2.msra.mxu0 0.0
        %1192 = vmatprep.subr.mxu0 0.0
        %1193 = vmatpush2.msra.mxu0 0.0
        %1194 = vmatprep.subr.mxu0 0.0
        %1195 = vmatpush2.msra.mxu0 0.0
        %1196 = vmatprep.subr.mxu0 0.0
        %1197 = vmatpush2.msra.mxu0 0.0
        %1198 = vmatprep.subr.mxu0 0.0
        %1199 = vmatpush2.msra.mxu0 0.0
        %1200 = vmatprep.subr.mxu0 0.0
        %1201 = vmatpush2.msra.mxu0 0.0
        %1202 = vmatprep.subr.mxu0 0.0
        %1203 = vmatpush2.msra.mxu0 0.0
        %1204 = vmatprep.subr.mxu0 0.0
        %1205 = vmatpush2.msra.mxu0 0.0
        %1206 = vmatprep.subr.mxu0 0.0
        %1207 = vmatpush2.msra.mxu0 0.0
        %1208 = vmatprep.mubr.f32.mxu0 0.0
        %v1209 = vand.u32 %v828, 4294901760
        %v1210 = vsub.f32 %v828, %v1209
        %v1211 = vand.u32 %v1210, 4294901760
        %1212 = vmatmul.mubr.f32.gmra.mxu0 %v1211
        %v1213 = vpop.f32.mrf.mxu0
        %v1214 = vadd.f32 %v1118, %v1213
        %v1215 = vpop.f32.mrf.mxu0
        %1216 = vmatprep.mubr.f32.mxu0 0.0
        %v1217 = vand.u32 %v831, 4294901760
        %v1218 = vsub.f32 %v831, %v1217
        %v1219 = vand.u32 %v1218, 4294901760
        %1220 = vmatmul.mubr.f32.gmra.mxu0 %v1219
        %v1221 = vpop.f32.mrf.mxu0
        %v1222 = vadd.f32 %v1125, %v1221
        %v1223 = vpop.f32.mrf.mxu0
        %1224 = vmatprep.mubr.f32.mxu0 0.0
        %v1225 = vand.u32 %v834, 4294901760
        %v1226 = vsub.f32 %v834, %v1225
        %v1227 = vand.u32 %v1226, 4294901760
        %1228 = vmatmul.mubr.f32.gmra.mxu0 %v1227
        %v1229 = vpop.f32.mrf.mxu0
        %v1230 = vadd.f32 %v1132, %v1229
        %v1231 = vpop.f32.mrf.mxu0
        %1232 = vmatprep.mubr.f32.mxu0 0.0
        %v1233 = vand.u32 %v837, 4294901760
        %v1234 = vsub.f32 %v837, %v1233
        %v1235 = vand.u32 %v1234, 4294901760
        %1236 = vmatmul.mubr.f32.gmra.mxu0 %v1235
        %v1237 = vpop.f32.mrf.mxu0
        %v1238 = vadd.f32 %v1139, %v1237
        %v1239 = vpop.f32.mrf.mxu0
        %1240 = vdwg.mxu0
        %1241 = vmatprep.subr.mxu0 0.0
        %1242 = vmatpush1.msra.mxu0 0.0
        %1243 = vmatprep.subr.mxu0 0.0
        %1244 = vmatpush1.msra.mxu0 0.0
        %1245 = vmatprep.subr.mxu0 0.0
        %1246 = vmatpush1.msra.mxu0 0.0
        %1247 = vmatprep.subr.mxu0 0.0
        %1248 = vmatpush1.msra.mxu0 0.0
        %1249 = vmatprep.subr.mxu0 0.0
        %1250 = vmatpush1.msra.mxu0 0.0
        %1251 = vmatprep.subr.mxu0 0.0
        %1252 = vmatpush1.msra.mxu0 0.0
        %1253 = vmatprep.subr.mxu0 0.0
        %1254 = vmatpush1.msra.mxu0 0.0
        %1255 = vmatprep.subr.mxu0 0.0
        %1256 = vmatpush1.msra.mxu0 0.0
        %1257 = vmatprep.subr.mxu0 0.0
        %1258 = vmatpush1.msra.mxu0 0.0
        %1259 = vmatprep.subr.mxu0 0.0
        %1260 = vmatpush1.msra.mxu0 0.0
        %1261 = vmatprep.subr.mxu0 0.0
        %1262 = vmatpush1.msra.mxu0 0.0
        %1263 = vmatprep.subr.mxu0 0.0
        %1264 = vmatpush1.msra.mxu0 0.0
        %1265 = vmatprep.subr.mxu0 0.0
        %1266 = vmatpush1.msra.mxu0 0.0
        %1267 = vmatprep.subr.mxu0 0.0
        %1268 = vmatpush1.msra.mxu0 0.0
        %1269 = vmatprep.subr.mxu0 0.0
        %v1270 = vand.u32 %v826, 4294901760
        %v1271 = vsub.f32 %v826, %v1270
        %v1272 = vand.u32 %v1271, 4294901760
        %1273 = vmatpush1.msra.mxu0 %v1272
        %1274 = vmatprep.subr.mxu0 0.0
        %v1275 = vand.u32 %v825, 4294901760
        %v1276 = vsub.f32 %v825, %v1275
        %v1277 = vand.u32 %v1276, 4294901760
        %1278 = vmatpush1.msra.mxu0 %v1277
        %1279 = vmatprep.subr.mxu0 0.0
        %1280 = vmatpush2.msra.mxu0 0.0
        %1281 = vmatprep.subr.mxu0 0.0
        %1282 = vmatpush2.msra.mxu0 0.0
        %1283 = vmatprep.subr.mxu0 0.0
        %1284 = vmatpush2.msra.mxu0 0.0
        %1285 = vmatprep.subr.mxu0 0.0
        %1286 = vmatpush2.msra.mxu0 0.0
        %1287 = vmatprep.subr.mxu0 0.0
        %1288 = vmatpush2.msra.mxu0 0.0
        %1289 = vmatprep.subr.mxu0 0.0
        %1290 = vmatpush2.msra.mxu0 0.0
        %1291 = vmatprep.subr.mxu0 0.0
        %1292 = vmatpush2.msra.mxu0 0.0
        %1293 = vmatprep.subr.mxu0 0.0
        %1294 = vmatpush2.msra.mxu0 0.0
        %1295 = vmatprep.subr.mxu0 0.0
        %1296 = vmatpush2.msra.mxu0 0.0
        %1297 = vmatprep.subr.mxu0 0.0
        %1298 = vmatpush2.msra.mxu0 0.0
        %1299 = vmatprep.subr.mxu0 0.0
        %1300 = vmatpush2.msra.mxu0 0.0
        %1301 = vmatprep.subr.mxu0 0.0
        %1302 = vmatpush2.msra.mxu0 0.0
        %1303 = vmatprep.subr.mxu0 0.0
        %1304 = vmatpush2.msra.mxu0 0.0
        %1305 = vmatprep.subr.mxu0 0.0
        %1306 = vmatpush2.msra.mxu0 0.0
        %1307 = vmatprep.subr.mxu0 0.0
        %1308 = vmatpush2.msra.mxu0 0.0
        %1309 = vmatprep.subr.mxu0 0.0
        %1310 = vmatpush2.msra.mxu0 0.0
        %1311 = vmatprep.mubr.f32.mxu0 0.0
        %v1312 = vand.u32 %v828, 4294901760
        %1313 = vmatmul.mubr.f32.gmra.mxu0 %v1312
        %v1314 = vpop.f32.mrf.mxu0
        %v1315 = vadd.f32 %v1214, %v1314
        %v1316 = vpop.f32.mrf.mxu0
        %1317 = vmatprep.mubr.f32.mxu0 0.0
        %v1318 = vand.u32 %v831, 4294901760
        %1319 = vmatmul.mubr.f32.gmra.mxu0 %v1318
        %v1320 = vpop.f32.mrf.mxu0
        %v1321 = vadd.f32 %v1222, %v1320
        %v1322 = vpop.f32.mrf.mxu0
        %1323 = vmatprep.mubr.f32.mxu0 0.0
        %v1324 = vand.u32 %v834, 4294901760
        %1325 = vmatmul.mubr.f32.gmra.mxu0 %v1324
        %v1326 = vpop.f32.mrf.mxu0
        %v1327 = vadd.f32 %v1230, %v1326
        %v1328 = vpop.f32.mrf.mxu0
        %1329 = vmatprep.mubr.f32.mxu0 0.0
        %v1330 = vand.u32 %v837, 4294901760
        %1331 = vmatmul.mubr.f32.gmra.mxu0 %v1330
        %v1332 = vpop.f32.mrf.mxu0
        %v1333 = vadd.f32 %v1238, %v1332
        %v1334 = vpop.f32.mrf.mxu0
        %1335 = vdwg.mxu0
        %1336 = vmatprep.subr.mxu0 0.0
        %1337 = vmatpush1.msra.mxu0 0.0
        %1338 = vmatprep.subr.mxu0 0.0
        %1339 = vmatpush1.msra.mxu0 0.0
        %1340 = vmatprep.subr.mxu0 0.0
        %1341 = vmatpush1.msra.mxu0 0.0
        %1342 = vmatprep.subr.mxu0 0.0
        %1343 = vmatpush1.msra.mxu0 0.0
        %1344 = vmatprep.subr.mxu0 0.0
        %1345 = vmatpush1.msra.mxu0 0.0
        %1346 = vmatprep.subr.mxu0 0.0
        %1347 = vmatpush1.msra.mxu0 0.0
        %1348 = vmatprep.subr.mxu0 0.0
        %1349 = vmatpush1.msra.mxu0 0.0
        %1350 = vmatprep.subr.mxu0 0.0
        %1351 = vmatpush1.msra.mxu0 0.0
        %1352 = vmatprep.subr.mxu0 0.0
        %1353 = vmatpush1.msra.mxu0 0.0
        %1354 = vmatprep.subr.mxu0 0.0
        %1355 = vmatpush1.msra.mxu0 0.0
        %1356 = vmatprep.subr.mxu0 0.0
        %1357 = vmatpush1.msra.mxu0 0.0
        %1358 = vmatprep.subr.mxu0 0.0
        %1359 = vmatpush1.msra.mxu0 0.0
        %1360 = vmatprep.subr.mxu0 0.0
        %1361 = vmatpush1.msra.mxu0 0.0
        %1362 = vmatprep.subr.mxu0 0.0
        %1363 = vmatpush1.msra.mxu0 0.0
        %1364 = vmatprep.subr.mxu0 0.0
        %v1365 = vand.u32 %v826, 4294901760
        %1366 = vmatpush1.msra.mxu0 %v1365
        %1367 = vmatprep.subr.mxu0 0.0
        %v1368 = vand.u32 %v825, 4294901760
        %1369 = vmatpush1.msra.mxu0 %v1368
        %1370 = vmatprep.subr.mxu0 0.0
        %1371 = vmatpush2.msra.mxu0 0.0
        %1372 = vmatprep.subr.mxu0 0.0
        %1373 = vmatpush2.msra.mxu0 0.0
        %1374 = vmatprep.subr.mxu0 0.0
        %1375 = vmatpush2.msra.mxu0 0.0
        %1376 = vmatprep.subr.mxu0 0.0
        %1377 = vmatpush2.msra.mxu0 0.0
        %1378 = vmatprep.subr.mxu0 0.0
        %1379 = vmatpush2.msra.mxu0 0.0
        %1380 = vmatprep.subr.mxu0 0.0
        %1381 = vmatpush2.msra.mxu0 0.0
        %1382 = vmatprep.subr.mxu0 0.0
        %1383 = vmatpush2.msra.mxu0 0.0
        %1384 = vmatprep.subr.mxu0 0.0
        %1385 = vmatpush2.msra.mxu0 0.0
        %1386 = vmatprep.subr.mxu0 0.0
        %1387 = vmatpush2.msra.mxu0 0.0
        %1388 = vmatprep.subr.mxu0 0.0
        %1389 = vmatpush2.msra.mxu0 0.0
        %1390 = vmatprep.subr.mxu0 0.0
        %1391 = vmatpush2.msra.mxu0 0.0
        %1392 = vmatprep.subr.mxu0 0.0
        %1393 = vmatpush2.msra.mxu0 0.0
        %1394 = vmatprep.subr.mxu0 0.0
        %1395 = vmatpush2.msra.mxu0 0.0
        %1396 = vmatprep.subr.mxu0 0.0
        %1397 = vmatpush2.msra.mxu0 0.0
        %1398 = vmatprep.subr.mxu0 0.0
        %1399 = vmatpush2.msra.mxu0 0.0
        %1400 = vmatprep.subr.mxu0 0.0
        %1401 = vmatpush2.msra.mxu0 0.0
        %1402 = vmatprep.mubr.f32.mxu0 0.0
        %v1403 = vand.u32 %v828, 4294901760
        %1404 = vmatmul.mubr.f32.gmra.mxu0 %v1403
        %v1405 = vpop.f32.mrf.mxu0
        %v1406 = vadd.f32 %v1315, %v1405
        %v1407 = vpop.f32.mrf.mxu0
        %1408 = vmatprep.mubr.f32.mxu0 0.0
        %v1409 = vand.u32 %v831, 4294901760
        %1410 = vmatmul.mubr.f32.gmra.mxu0 %v1409
        %v1411 = vpop.f32.mrf.mxu0
        %v1412 = vadd.f32 %v1321, %v1411
        %v1413 = vpop.f32.mrf.mxu0
        %1414 = vmatprep.mubr.f32.mxu0 0.0
        %v1415 = vand.u32 %v834, 4294901760
        %1416 = vmatmul.mubr.f32.gmra.mxu0 %v1415
        %v1417 = vpop.f32.mrf.mxu0
        %v1418 = vadd.f32 %v1327, %v1417
        %v1419 = vpop.f32.mrf.mxu0
        %1420 = vmatprep.mubr.f32.mxu0 0.0
        %v1421 = vand.u32 %v837, 4294901760
        %1422 = vmatmul.mubr.f32.gmra.mxu0 %v1421
        %v1423 = vpop.f32.mrf.mxu0
        %v1424 = vadd.f32 %v1333, %v1423
        %v1425 = vpop.f32.mrf.mxu0
        %1426 = vdwg.mxu0
        %v1427 = vmax.f32 %v790, %v1406
        %v1428 = vmax.f32 %v796, %v1412
        %v1429 = vmax.f32 %v802, %v1418
        %v1430 = vmax.f32 %v808, %v1424
        %vm1431 = vcmask 64512
        %1432 = vst.msk [vmem:[%s164] sm:$0xff] %vm1431, %v1427
        %1433 = vst.msk [vmem:[%s164 + $0x8] sm:$0xff] %vm1431, %v1428
        %1434 = vst.msk [vmem:[%s164 + $0x10] sm:$0xff] %vm1431, %v1429
        %1435 = vst.msk [vmem:[%s164 + $0x18] sm:$0xff] %vm1431, %v1430
        %s1436 = sand.u32 %s93, 1
        %s1437 = scalar_lea.sflag [#allocation3], %s1436
        %s1438 = sand.u32 %s93, 1
        %s1439 = smul.addr %s1438, 32
        %s1440 = scalar_lea.vmem [#allocation2], %s1439
        // Predicated region
        $region33: #{maxpool2d.1} parent=31 // pred_check
          %p1441 = pneg %p103
        $region34: #{maxpool2d.1} parent=31 // pred_check_branch
          %1443 = sbr.rel (%p1441) target = $region36
        $region35: #{maxpool2d.1} parent=31 // pred_region
          %s1444 = smul.u32 4, %s17
          %s1446 = ssub.s32 512, 512
          %1447 = vsyncadd %s1437, %s1446
          %s1448 = smul.addr %s1444, 128
          %s1449 = scalar_lea.hbm %s3, %s1448
          %s1450 = sshll.u32 %s1440, 4
          %s1451 = int_to_ptr.vmem [resolvable:$true] %s1450
          %1456 = dma.vmem_to_hbm [thread:$0]  %s1451, 512, %s1449, %s1437, 128, 128, 8
        $region36: #{maxpool2d.1} parent=31 // pred_fallthru
          _
      $region32: #{maxpool2d.1} parent=5 // pred_fallthru
        _
      %p1457 = scmp.le.s32.totalorder 2, %s12
      // Predicated region
      $region37: #{maxpool2d.1} parent=5 // pred_check
        %p1458 = pneg %p1457
      $region38: #{maxpool2d.1} parent=5 // pred_check_branch
        %1460 = sbr.rel (%p1458) target = $region40
      $region39: #{maxpool2d.1} parent=5 // pred_region
        %s1461 = ssub.s32 %s12, 2
        // Predicated region
        $region41: #{maxpool2d.1} parent=39 // pred_check
          %p1462 = pneg %p109
        $region42: #{maxpool2d.1} parent=39 // pred_check_branch
          %1464 = sbr.rel (%p1462) target = $region44
        $region43: #{maxpool2d.1} parent=39 // pred_region
          %s1465 = sand.u32 %s94, 1
          %s1466 = scalar_lea.sflag [#allocation3], %s1465
          %s1467 = sand.u32 %s94, 1
          %s1468 = smul.addr %s1467, 32
          %s1469 = scalar_lea.vmem [#allocation2], %s1468
          %1470 = dma.done %s1466, 512
        $region44: #{maxpool2d.1} parent=39 // pred_fallthru
          _
      $region40: #{maxpool2d.1} parent=5 // pred_fallthru
        _
    $region6: #{maxpool2d.1} parent=1 // loop_footer
      %s16 = sadd.s32 1, %s12
    $region7: #{maxpool2d.1} parent=1 // loop_footer_branch
      %11 = sbr.rel target = $region3
    $region8: #{maxpool2d.1} parent=1 // loop_exit
      _
    %1471 = vsyncpa [#allocation3], 1
    %s1472 = scalar_lea.sflag [#allocation3], 1
    %1473 = vsyncpa %s1472, 1

</llo_original>
